<compile_context>
chip_gen: v6e
topology: v6e:2x2x1
jax: 0.10.0
libtpu: 0.0.40
codegen_flags: <defaults>
</compile_context>

<pallas_src>
import itertools
from functools import partial

import jax
import jax.numpy as jnp
import numpy as np
from jax.experimental import pallas as pl
from jax.experimental.pallas import tpu as pltpu

# cost weights hard-coded in HungarianMatcher.__init__
_ALPHA1 = 1.0   # L1 box cost
_ALPHA2 = 2.5   # GIoU cost
_BETA1 = 2.0    # bbox group
_BETA2 = 1.0    # is_head
_BETA3 = 1.0    # watch_outside
_BETA4 = 2.0    # gaze heatmap


def _round_up(x, m):
    return (x + m - 1) // m * m


# ----------------------------- Pallas kernel --------------------------------

def _make_cost_kernel(GP):
    """Kernel computing one (TQ, N_pad) tile of the pairwise matching cost C."""

    def kernel(pred_ref, tgt_ref, gazeT_ref, out_ref):
        # --- prediction slab: [0:GP] gaze, [GP:GP+8] = cx,cy,w,h,ih0,ih1,wo0,wo1
        pg = pred_ref[:, :GP]                       # (TQ, GP)
        box = pred_ref[:, GP:GP + 8]                # (TQ, 8)
        pcx, pcy = box[:, 0:1], box[:, 1:2]
        pw, ph = box[:, 2:3], box[:, 3:4]
        ih0, ih1 = box[:, 4:5], box[:, 5:6]
        wo0, wo1 = box[:, 6:7], box[:, 7:8]

        # --- target slab, coordinate-major (targets along lanes)
        tgt = tgt_ref[...]                          # (8, N_pad)
        tx0, ty0 = tgt[0:1, :], tgt[1:2, :]
        tx1, ty1 = tgt[2:3, :], tgt[3:4, :]
        t_ih, t_wo = tgt[4:5, :], tgt[5:6, :]       # 0/1 labels

        # --- cost_bbox_l1: cdist(pred cxcywh, xyxy->cxcywh(gt), p=1)
        cost_l1 = (jnp.abs(pcx - (tx0 + tx1) * 0.5)
                   + jnp.abs(pcy - (ty0 + ty1) * 0.5)
                   + jnp.abs(pw - (tx1 - tx0))
                   + jnp.abs(ph - (ty1 - ty0)))     # (TQ, N_pad)

        # --- cost_giou = -generalized_box_iou(cxcywh->xyxy(pred), gt xyxy)
        sx0 = pcx - 0.5 * pw
        sy0 = pcy - 0.5 * ph
        sx1 = pcx + 0.5 * pw
        sy1 = pcy + 0.5 * ph
        area1 = (sx1 - sx0) * (sy1 - sy0)           # (TQ, 1)
        area2 = (tx1 - tx0) * (ty1 - ty0)           # (1, N_pad)
        iw = jnp.maximum(jnp.minimum(sx1, tx1) - jnp.maximum(sx0, tx0), 0.0)
        ihh = jnp.maximum(jnp.minimum(sy1, ty1) - jnp.maximum(sy0, ty0), 0.0)
        inter = iw * ihh
        union = area1 + area2 - inter
        ew = jnp.maximum(jnp.maximum(sx1, tx1) - jnp.minimum(sx0, tx0), 0.0)
        eh = jnp.maximum(jnp.maximum(sy1, ty1) - jnp.minimum(sy0, ty0), 0.0)
        enc = ew * eh
        iou = inter * pl.reciprocal(union, approx=False)
        giou = iou - (enc - union) * pl.reciprocal(enc, approx=False)
        cost_giou = -giou

        # --- class costs: -logits[:, label] with label in {0,1}  (select, no gather)
        cost_is_head = -(ih1 * t_ih + ih0 * (1.0 - t_ih))
        cost_watch = -(wo1 * t_wo + wo0 * (1.0 - t_wo))

        # --- cost_gaze: cdist(p=2) via ||p||^2 + ||g||^2 - 2 p.g  (MXU)
        gT = gazeT_ref[...]                         # (GP, N_pad)
        p_sq = jnp.sum(pg * pg, axis=-1, keepdims=True)     # (TQ, 1)
        g_sq = jnp.sum(gT * gT, axis=0, keepdims=True)      # (1, N_pad)
        cross = jnp.dot(pg, gT, preferred_element_type=jnp.float32)
        cost_gaze = jnp.sqrt(jnp.maximum(p_sq + g_sq - 2.0 * cross, 0.0))

        cost_bbox = _ALPHA1 * cost_l1 + _ALPHA2 * cost_giou
        out_ref[...] = (_BETA1 * cost_bbox + _BETA2 * cost_is_head
                        + _BETA3 * cost_watch + _BETA4 * cost_gaze)

    return kernel


# ----------------------------- device-side wrapper ---------------------------

@jax.jit
def _cost_matrix_device(head_loc_pred, is_head_pred, watch_pred, gaze_pred,
                        head_loc_gt, is_head_gt, watch_gt, gaze_gt):
    """Pack inputs into lane-dense slabs and run the Pallas cost kernel.

    Returns the full (B*Q, B*M) cost matrix (including padded-GT columns; the
    host-side matcher drops invalid columns before the assignment)."""
    B, Q, _ = head_loc_pred.shape
    _, M, _ = head_loc_gt.shape
    G = gaze_pred.shape[-1]
    BQ, N = B * Q, B * M

    GP = _round_up(G, 128)
    TQ = _round_up(BQ, 8) if BQ <= 512 else 256
    BQ_pad = _round_up(BQ, TQ)
    N_pad = _round_up(N, 128)
    DP = GP + 128

    f32 = jnp.float32

    # prediction slab (BQ_pad, DP): [gaze | pad | cx cy w h ih0 ih1 wo0 wo1 | pad]
    pred_feat = jnp.concatenate(
        [gaze_pred.reshape(BQ, G).astype(f32),
         jnp.zeros((BQ, GP - G), f32),
         head_loc_pred.reshape(BQ, 4).astype(f32),
         is_head_pred.reshape(BQ, 2).astype(f32),
         watch_pred.reshape(BQ, 2).astype(f32)], axis=-1)          # (BQ, GP+8)
    pred_slab = jnp.pad(pred_feat, ((0, BQ_pad - BQ), (0, DP - (GP + 8))))

    # target slab, coordinate-major (8, N_pad): x0,y0,x1,y1,is_head,watch,0,0
    tgt_box = head_loc_gt.reshape(N, 4).astype(f32)
    ih_gt = is_head_gt.reshape(N, -1)[:, 0].astype(f32)
    wo_gt = watch_gt.reshape(N, -1)[:, 0].astype(f32)
    tgt_feat = jnp.concatenate([tgt_box.T, ih_gt[None, :], wo_gt[None, :]], axis=0)
    tgt_coord = jnp.pad(tgt_feat, ((0, 2), (0, N_pad - N)))        # (8, N_pad)

    # transposed gaze GT (GP, N_pad)
    gaze_gt_T = jnp.pad(gaze_gt.reshape(N, G).astype(f32).T,
                        ((0, GP - G), (0, N_pad - N)))

    cost = pl.pallas_call(
        _make_cost_kernel(GP),
        out_shape=jax.ShapeDtypeStruct((BQ_pad, N_pad), jnp.float32),
        grid=(BQ_pad // TQ,),
        in_specs=[
            pl.BlockSpec((TQ, DP), lambda i: (i, 0)),
            pl.BlockSpec((8, N_pad), lambda i: (0, 0)),      # resident across rows
            pl.BlockSpec((GP, N_pad), lambda i: (0, 0)),     # resident across rows
        ],
        out_specs=pl.BlockSpec((TQ, N_pad), lambda i: (i, 0)),
        compiler_params=pltpu.CompilerParams(
            dimension_semantics=("parallel",)),
    )(pred_slab, tgt_coord, gaze_gt_T)

    return cost[:BQ, :N]


# ----------------------------- host-side assignment ---------------------------

def _linear_sum_assignment(cost):
    """Minimal Hungarian (shortest augmenting path with potentials), host-side.
    Matches scipy.optimize.linear_sum_assignment semantics; row_ind sorted."""
    # TODO(synk): the Hungarian assignment is an inherently sequential, data-dependent
    # algorithm with no clean Pallas equivalent; it runs on host like the PyTorch code.
    cost = np.asarray(cost, dtype=np.float64)
    transposed = cost.shape[0] > cost.shape[1]
    if transposed:
        cost = cost.T
    n, m = cost.shape                      # n <= m
    INF = float("inf")
    u = np.zeros(n + 1)
    v = np.zeros(m + 1)
    p = np.zeros(m + 1, dtype=np.int64)    # p[j]: row matched to col j (1-based)
    way = np.zeros(m + 1, dtype=np.int64)
    for i in range(1, n + 1):
        p[0] = i
        j0 = 0
        minv = np.full(m + 1, INF)
        used = np.zeros(m + 1, dtype=bool)
        while True:
            used[j0] = True
            i0 = p[j0]
            delta = INF
            j1 = 0
            for j in range(1, m + 1):
                if not used[j]:
                    cur = cost[i0 - 1, j - 1] - u[i0] - v[j]
                    if cur < minv[j]:
                        minv[j] = cur
                        way[j] = j0
                    if minv[j] < delta:
                        delta = minv[j]
                        j1 = j
            for j in range(m + 1):
                if used[j]:
                    u[p[j]] += delta
                    v[j] -= delta
                else:
                    minv[j] -= delta
            j0 = j1
            if p[j0] == 0:
                break
        while j0:
            j1 = way[j0]
            p[j0] = p[j1]
            j0 = j1
    rows, cols = [], []
    for j in range(1, m + 1):
        if p[j] != 0:
            rows.append(p[j] - 1)
            cols.append(j - 1)
    rows = np.asarray(rows, dtype=np.int64)
    cols = np.asarray(cols, dtype=np.int64)
    if transposed:
        rows, cols = cols, rows
    order = np.argsort(rows, kind="stable")
    return rows[order], cols[order]


# ----------------------------- matcher wrapper --------------------------------

class HungarianMatcherPallas:
    def __init__(self, cost_class=1, cost_bbox=1, cost_giou=1):
        assert cost_class != 0 or cost_bbox != 0 or cost_giou != 0
        self.cost_class = cost_class
        self.cost_bbox = cost_bbox
        self.cost_giou = cost_giou

    def cost_matrix(self, outputs, targets):
        return _cost_matrix_device(
            outputs['head_loc_pred'], outputs['is_head_pred'],
            outputs['watch_outside_pred'], outputs['gaze_heatmap_pred'],
            targets['head_loc_gt'], targets['is_head_gt'],
            targets['watch_outside_gt'], targets['gaze_heatmap_gt'])

    def __call__(self, outputs, targets):
        return self.forward(outputs, targets)

    def forward(self, outputs, targets):
        head_loc_gt = np.asarray(jax.device_get(targets['head_loc_gt']))
        B, M = head_loc_gt.shape[:2]
        Q = outputs['head_loc_pred'].shape[1]

        C = np.asarray(jax.device_get(self.cost_matrix(outputs, targets)))
        C = C.reshape(B, Q, B * M)

        # padding mask: GT rows with no coordinate exactly 0 are valid
        valid = (head_loc_gt == 0).sum(-1) == 0          # (B, M)
        indices = []
        for b in range(B):
            cols = np.nonzero(valid[b])[0] + b * M
            c_b = C[b][:, cols]                          # (Q, sizes[b])
            row_ind, col_ind = _linear_sum_assignment(c_b)
            indices.append((row_ind.astype(np.int64), col_ind.astype(np.int64)))
        return indices


# ----------------------------- pure-JAX reference -----------------------------

def reference_cost_matrix(outputs, targets):
    hp = outputs['head_loc_pred']
    B, Q, _ = hp.shape
    hg = targets['head_loc_gt']
    _, M, _ = hg.shape
    G = outputs['gaze_heatmap_pred'].shape[-1]

    out_bbox = hp.reshape(B * Q, 4).astype(jnp.float32)
    tgt_bbox = hg.reshape(B * M, 4).astype(jnp.float32)
    ihp = outputs['is_head_pred'].reshape(B * Q, 2).astype(jnp.float32)
    wop = outputs['watch_outside_pred'].reshape(B * Q, 2).astype(jnp.float32)
    gp = outputs['gaze_heatmap_pred'].reshape(B * Q, G).astype(jnp.float32)
    ihg = targets['is_head_gt'].reshape(B * M, -1)[:, 0].astype(jnp.int32)
    wog = targets['watch_outside_gt'].reshape(B * M, -1)[:, 0].astype(jnp.int32)
    gg = targets['gaze_heatmap_gt'].reshape(B * M, G).astype(jnp.float32)

    tgt_cxcywh = jnp.stack([(tgt_bbox[:, 0] + tgt_bbox[:, 2]) / 2,
                            (tgt_bbox[:, 1] + tgt_bbox[:, 3]) / 2,
                            tgt_bbox[:, 2] - tgt_bbox[:, 0],
                            tgt_bbox[:, 3] - tgt_bbox[:, 1]], -1)
    cost_l1 = jnp.sum(jnp.abs(out_bbox[:, None, :] - tgt_cxcywh[None, :, :]), -1)

    cx, cy, w, h = [out_bbox[:, i] for i in range(4)]
    pb = jnp.stack([cx - 0.5 * w, cy - 0.5 * h, cx + 0.5 * w, cy + 0.5 * h], -1)
    area1 = (pb[:, 2] - pb[:, 0]) * (pb[:, 3] - pb[:, 1])
    area2 = (tgt_bbox[:, 2] - tgt_bbox[:, 0]) * (tgt_bbox[:, 3] - tgt_bbox[:, 1])
    lt = jnp.maximum(pb[:, None, :2], tgt_bbox[None, :, :2])
    rb = jnp.minimum(pb[:, None, 2:], tgt_bbox[None, :, 2:])
    wh_ = jnp.maximum(rb - lt, 0.0)
    inter = wh_[..., 0] * wh_[..., 1]
    union = area1[:, None] + area2[None, :] - inter
    iou = inter / union
    lt2 = jnp.minimum(pb[:, None, :2], tgt_bbox[None, :, :2])
    rb2 = jnp.maximum(pb[:, None, 2:], tgt_bbox[None, :, 2:])
    wh2 = jnp.maximum(rb2 - lt2, 0.0)
    enc = wh2[..., 0] * wh2[..., 1]
    giou = iou - (enc - union) / enc
    cost_giou = -giou

    cost_is_head = -ihp[:, ihg]
    cost_watch = -wop[:, wog]
    cost_gaze = jnp.sqrt(jnp.sum((gp[:, None, :] - gg[None, :, :]) ** 2, -1))

    cost_bbox = _ALPHA1 * cost_l1 + _ALPHA2 * cost_giou
    return (_BETA1 * cost_bbox + _BETA2 * cost_is_head
            + _BETA3 * cost_watch + _BETA4 * cost_gaze)


# ----------------------------- main -------------------------------------------

if __name__ == "__main__":
    B, Q, M, G = 2, 8, 4, 64
    key = jax.random.PRNGKey(0)
    ks = jax.random.split(key, 10)

    # predictions (cxcywh boxes, 2-class logits, gaze heatmap)
    cxcy = jax.random.uniform(ks[0], (B, Q, 2), minval=0.3, maxval=0.7)
    wh = jax.random.uniform(ks[1], (B, Q, 2), minval=0.1, maxval=0.3)
    head_loc_pred = jnp.concatenate([cxcy, wh], -1)
    is_head_pred = jax.random.normal(ks[2], (B, Q, 2))
    watch_outside_pred = jax.random.normal(ks[3], (B, Q, 2))
    gaze_heatmap_pred = jax.random.uniform(ks[4], (B, Q, G))

    # targets (xyxy boxes, normalized); last GT slot per image is zero padding
    xy0 = jax.random.uniform(ks[5], (B, M, 2), minval=0.1, maxval=0.5)
    gwh = jax.random.uniform(ks[6], (B, M, 2), minval=0.1, maxval=0.3)
    head_loc_gt = jnp.concatenate([xy0, xy0 + gwh], -1)
    head_loc_gt = head_loc_gt.at[:, -1, :].set(0.0)
    is_head_gt = jax.random.bernoulli(ks[7], 0.7, (B, M, 1)).astype(jnp.float32)
    watch_outside_gt = jax.random.bernoulli(ks[8], 0.3, (B, M, 1)).astype(jnp.float32)
    gaze_heatmap_gt = jax.random.uniform(ks[9], (B, M, G))

    outputs = {'head_loc_pred': head_loc_pred,
               'is_head_pred': is_head_pred,
               'watch_outside_pred': watch_outside_pred,
               'gaze_heatmap_pred': gaze_heatmap_pred}
    targets = {'head_loc_gt': head_loc_gt,
               'is_head_gt': is_head_gt,
               'watch_outside_gt': watch_outside_gt,
               'gaze_heatmap_gt': gaze_heatmap_gt}

    matcher = HungarianMatcherPallas()

    # 1) cost-matrix correctness vs pure-JAX reference
    C_kernel = jax.block_until_ready(matcher.cost_matrix(outputs, targets))
    C_ref = reference_cost_matrix(outputs, targets)
    np.testing.assert_allclose(np.asarray(C_kernel), np.asarray(C_ref),
                               rtol=1e-4, atol=1e-4)

    # 2) matching: verify the Hungarian assignment is optimal (brute force)
    indices = matcher(outputs, targets)
    Cnp = np.asarray(C_kernel).reshape(B, Q, B * M)
    valid = np.asarray((np.asarray(head_loc_gt) == 0).sum(-1) == 0)
    for b, (qi, ti) in enumerate(indices):
        cols = np.nonzero(valid[b])[0] + b * M
        c_b = Cnp[b][:, cols]
        S = c_b.shape[1]
        assert len(qi) == S and len(set(qi.tolist())) == S
        got_cost = float(c_b[qi, ti].sum())
        best_cost = min(sum(c_b[perm[s], s] for s in range(S))
                        for perm in itertools.permutations(range(Q), S))
        assert abs(got_cost - best_cost) <= 1e-3 * max(1.0, abs(best_cost)), \
            f"batch {b}: got {got_cost}, optimal {best_cost}"

    print("KERNEL_OK")
</pallas_src>

<mosaic_0001>
module attributes {stable_mosaic.version = 11 : i64} {
  func.func @kernel(%arg0: i32, %arg1: memref<16x256xf32, #tpu.memory_space<vmem>>, %arg2: memref<8x128xf32, #tpu.memory_space<vmem>>, %arg3: memref<128x128xf32, #tpu.memory_space<vmem>>, %arg4: memref<16x128xf32, #tpu.memory_space<vmem>>) attributes {dimension_semantics = [#tpu.dimension_semantics<parallel>], iteration_bounds = array<i64: 1>, scalar_prefetch = 0 : i64, scratch_operands = 0 : i64, tpu.core_type = #tpu.core_type<tc>, window_params = [{transform_indices = @transform_0, window_bounds = array<i64: 16, 256>}, {pipeline_mode = #tpu.pipeline_mode<synchronous>, transform_indices = @transform_1, window_bounds = array<i64: 8, 128>}, {pipeline_mode = #tpu.pipeline_mode<synchronous>, transform_indices = @transform_2, window_bounds = array<i64: 128, 128>}, {transform_indices = @transform_3, window_bounds = array<i64: 16, 128>}]} {
    %c0 = arith.constant 0 : index
    %c0_0 = arith.constant 0 : index
    %0 = vector.load %arg1[%c0, %c0_0] : memref<16x256xf32, #tpu.memory_space<vmem>>, vector<16x128xf32>
    %c0_1 = arith.constant 0 : index
    %c128 = arith.constant 128 : index
    %1 = vector.load %arg1[%c0_1, %c128] : memref<16x256xf32, #tpu.memory_space<vmem>>, vector<16x8xf32>
    %2 = vector.extract_strided_slice %1 {offsets = [0, 0], sizes = [16, 1], strides = [1, 1]} : vector<16x8xf32> to vector<16x1xf32>
    %3 = vector.extract_strided_slice %1 {offsets = [0, 1], sizes = [16, 1], strides = [1, 1]} : vector<16x8xf32> to vector<16x1xf32>
    %4 = vector.extract_strided_slice %1 {offsets = [0, 2], sizes = [16, 1], strides = [1, 1]} : vector<16x8xf32> to vector<16x1xf32>
    %5 = vector.extract_strided_slice %1 {offsets = [0, 3], sizes = [16, 1], strides = [1, 1]} : vector<16x8xf32> to vector<16x1xf32>
    %6 = vector.extract_strided_slice %1 {offsets = [0, 4], sizes = [16, 1], strides = [1, 1]} : vector<16x8xf32> to vector<16x1xf32>
    %7 = vector.extract_strided_slice %1 {offsets = [0, 5], sizes = [16, 1], strides = [1, 1]} : vector<16x8xf32> to vector<16x1xf32>
    %8 = vector.extract_strided_slice %1 {offsets = [0, 6], sizes = [16, 1], strides = [1, 1]} : vector<16x8xf32> to vector<16x1xf32>
    %9 = vector.extract_strided_slice %1 {offsets = [0, 7], sizes = [16, 1], strides = [1, 1]} : vector<16x8xf32> to vector<16x1xf32>
    %c0_2 = arith.constant 0 : index
    %c0_3 = arith.constant 0 : index
    %10 = vector.load %arg2[%c0_2, %c0_3] : memref<8x128xf32, #tpu.memory_space<vmem>>, vector<8x128xf32>
    %11 = vector.extract_strided_slice %10 {offsets = [0, 0], sizes = [1, 128], strides = [1, 1]} : vector<8x128xf32> to vector<1x128xf32>
    %12 = vector.extract_strided_slice %10 {offsets = [1, 0], sizes = [1, 128], strides = [1, 1]} : vector<8x128xf32> to vector<1x128xf32>
    %13 = vector.extract_strided_slice %10 {offsets = [2, 0], sizes = [1, 128], strides = [1, 1]} : vector<8x128xf32> to vector<1x128xf32>
    %14 = vector.extract_strided_slice %10 {offsets = [3, 0], sizes = [1, 128], strides = [1, 1]} : vector<8x128xf32> to vector<1x128xf32>
    %15 = vector.extract_strided_slice %10 {offsets = [4, 0], sizes = [1, 128], strides = [1, 1]} : vector<8x128xf32> to vector<1x128xf32>
    %16 = vector.extract_strided_slice %10 {offsets = [5, 0], sizes = [1, 128], strides = [1, 1]} : vector<8x128xf32> to vector<1x128xf32>
    %17 = arith.addf %11, %13 : vector<1x128xf32>
    %cst = arith.constant 5.000000e-01 : f32
    %18 = vector.broadcast %cst : f32 to vector<1x128xf32>
    %19 = arith.mulf %17, %18 : vector<1x128xf32>
    %20 = vector.broadcast %2 : vector<16x1xf32> to vector<16x128xf32>
    %21 = vector.broadcast %19 : vector<1x128xf32> to vector<16x128xf32>
    %22 = arith.subf %20, %21 : vector<16x128xf32>
    %23 = math.absf %22 : vector<16x128xf32>
    %24 = arith.addf %12, %14 : vector<1x128xf32>
    %cst_4 = arith.constant 5.000000e-01 : f32
    %25 = vector.broadcast %cst_4 : f32 to vector<1x128xf32>
    %26 = arith.mulf %24, %25 : vector<1x128xf32>
    %27 = vector.broadcast %3 : vector<16x1xf32> to vector<16x128xf32>
    %28 = vector.broadcast %26 : vector<1x128xf32> to vector<16x128xf32>
    %29 = arith.subf %27, %28 : vector<16x128xf32>
    %30 = math.absf %29 : vector<16x128xf32>
    %31 = arith.addf %23, %30 : vector<16x128xf32>
    %32 = arith.subf %13, %11 : vector<1x128xf32>
    %33 = vector.broadcast %4 : vector<16x1xf32> to vector<16x128xf32>
    %34 = vector.broadcast %32 : vector<1x128xf32> to vector<16x128xf32>
    %35 = arith.subf %33, %34 : vector<16x128xf32>
    %36 = math.absf %35 : vector<16x128xf32>
    %37 = arith.addf %31, %36 : vector<16x128xf32>
    %38 = arith.subf %14, %12 : vector<1x128xf32>
    %39 = vector.broadcast %5 : vector<16x1xf32> to vector<16x128xf32>
    %40 = vector.broadcast %38 : vector<1x128xf32> to vector<16x128xf32>
    %41 = arith.subf %39, %40 : vector<16x128xf32>
    %42 = math.absf %41 : vector<16x128xf32>
    %43 = arith.addf %37, %42 : vector<16x128xf32>
    %cst_5 = arith.constant 5.000000e-01 : f32
    %44 = vector.broadcast %cst_5 : f32 to vector<16x1xf32>
    %45 = arith.mulf %44, %4 : vector<16x1xf32>
    %46 = arith.subf %2, %45 : vector<16x1xf32>
    %cst_6 = arith.constant 5.000000e-01 : f32
    %47 = vector.broadcast %cst_6 : f32 to vector<16x1xf32>
    %48 = arith.mulf %47, %5 : vector<16x1xf32>
    %49 = arith.subf %3, %48 : vector<16x1xf32>
    %cst_7 = arith.constant 5.000000e-01 : f32
    %50 = vector.broadcast %cst_7 : f32 to vector<16x1xf32>
    %51 = arith.mulf %50, %4 : vector<16x1xf32>
    %52 = arith.addf %2, %51 : vector<16x1xf32>
    %cst_8 = arith.constant 5.000000e-01 : f32
    %53 = vector.broadcast %cst_8 : f32 to vector<16x1xf32>
    %54 = arith.mulf %53, %5 : vector<16x1xf32>
    %55 = arith.addf %3, %54 : vector<16x1xf32>
    %56 = arith.subf %52, %46 : vector<16x1xf32>
    %57 = arith.subf %55, %49 : vector<16x1xf32>
    %58 = arith.mulf %56, %57 : vector<16x1xf32>
    %59 = arith.subf %13, %11 : vector<1x128xf32>
    %60 = arith.subf %14, %12 : vector<1x128xf32>
    %61 = arith.mulf %59, %60 : vector<1x128xf32>
    %62 = vector.broadcast %52 : vector<16x1xf32> to vector<16x128xf32>
    %63 = vector.broadcast %13 : vector<1x128xf32> to vector<16x128xf32>
    %64 = arith.minimumf %62, %63 : vector<16x128xf32>
    %65 = vector.broadcast %46 : vector<16x1xf32> to vector<16x128xf32>
    %66 = vector.broadcast %11 : vector<1x128xf32> to vector<16x128xf32>
    %67 = arith.maximumf %65, %66 : vector<16x128xf32>
    %68 = arith.subf %64, %67 : vector<16x128xf32>
    %cst_9 = arith.constant 0.000000e+00 : f32
    %69 = vector.broadcast %cst_9 : f32 to vector<16x128xf32>
    %70 = arith.maximumf %68, %69 : vector<16x128xf32>
    %71 = vector.broadcast %55 : vector<16x1xf32> to vector<16x128xf32>
    %72 = vector.broadcast %14 : vector<1x128xf32> to vector<16x128xf32>
    %73 = arith.minimumf %71, %72 : vector<16x128xf32>
    %74 = vector.broadcast %49 : vector<16x1xf32> to vector<16x128xf32>
    %75 = vector.broadcast %12 : vector<1x128xf32> to vector<16x128xf32>
    %76 = arith.maximumf %74, %75 : vector<16x128xf32>
    %77 = arith.subf %73, %76 : vector<16x128xf32>
    %cst_10 = arith.constant 0.000000e+00 : f32
    %78 = vector.broadcast %cst_10 : f32 to vector<16x128xf32>
    %79 = arith.maximumf %77, %78 : vector<16x128xf32>
    %80 = arith.mulf %70, %79 : vector<16x128xf32>
    %81 = vector.broadcast %58 : vector<16x1xf32> to vector<16x128xf32>
    %82 = vector.broadcast %61 : vector<1x128xf32> to vector<16x128xf32>
    %83 = arith.addf %81, %82 : vector<16x128xf32>
    %84 = arith.subf %83, %80 : vector<16x128xf32>
    %85 = vector.broadcast %52 : vector<16x1xf32> to vector<16x128xf32>
    %86 = vector.broadcast %13 : vector<1x128xf32> to vector<16x128xf32>
    %87 = arith.maximumf %85, %86 : vector<16x128xf32>
    %88 = vector.broadcast %46 : vector<16x1xf32> to vector<16x128xf32>
    %89 = vector.broadcast %11 : vector<1x128xf32> to vector<16x128xf32>
    %90 = arith.minimumf %88, %89 : vector<16x128xf32>
    %91 = arith.subf %87, %90 : vector<16x128xf32>
    %cst_11 = arith.constant 0.000000e+00 : f32
    %92 = vector.broadcast %cst_11 : f32 to vector<16x128xf32>
    %93 = arith.maximumf %91, %92 : vector<16x128xf32>
    %94 = vector.broadcast %55 : vector<16x1xf32> to vector<16x128xf32>
    %95 = vector.broadcast %14 : vector<1x128xf32> to vector<16x128xf32>
    %96 = arith.maximumf %94, %95 : vector<16x128xf32>
    %97 = vector.broadcast %49 : vector<16x1xf32> to vector<16x128xf32>
    %98 = vector.broadcast %12 : vector<1x128xf32> to vector<16x128xf32>
    %99 = arith.minimumf %97, %98 : vector<16x128xf32>
    %100 = arith.subf %96, %99 : vector<16x128xf32>
    %cst_12 = arith.constant 0.000000e+00 : f32
    %101 = vector.broadcast %cst_12 : f32 to vector<16x128xf32>
    %102 = arith.maximumf %100, %101 : vector<16x128xf32>
    %103 = arith.mulf %93, %102 : vector<16x128xf32>
    %104 = tpu.reciprocal %84 : vector<16x128xf32> -> vector<16x128xf32>
    %105 = arith.mulf %80, %104 : vector<16x128xf32>
    %106 = arith.subf %103, %84 : vector<16x128xf32>
    %107 = tpu.reciprocal %103 : vector<16x128xf32> -> vector<16x128xf32>
    %108 = arith.mulf %106, %107 : vector<16x128xf32>
    %109 = arith.subf %105, %108 : vector<16x128xf32>
    %cst_13 = arith.constant 0.000000e+00 : f32
    %110 = vector.broadcast %cst_13 : f32 to vector<16x128xf32>
    %111 = arith.subf %110, %109 : vector<16x128xf32>
    %112 = vector.broadcast %7 : vector<16x1xf32> to vector<16x128xf32>
    %113 = vector.broadcast %15 : vector<1x128xf32> to vector<16x128xf32>
    %114 = arith.mulf %112, %113 : vector<16x128xf32>
    %cst_14 = arith.constant 1.000000e+00 : f32
    %115 = vector.broadcast %cst_14 : f32 to vector<1x128xf32>
    %116 = arith.subf %115, %15 : vector<1x128xf32>
    %117 = vector.broadcast %6 : vector<16x1xf32> to vector<16x128xf32>
    %118 = vector.broadcast %116 : vector<1x128xf32> to vector<16x128xf32>
    %119 = arith.mulf %117, %118 : vector<16x128xf32>
    %120 = arith.addf %114, %119 : vector<16x128xf32>
    %cst_15 = arith.constant 0.000000e+00 : f32
    %121 = vector.broadcast %cst_15 : f32 to vector<16x128xf32>
    %122 = arith.subf %121, %120 : vector<16x128xf32>
    %123 = vector.broadcast %9 : vector<16x1xf32> to vector<16x128xf32>
    %124 = vector.broadcast %16 : vector<1x128xf32> to vector<16x128xf32>
    %125 = arith.mulf %123, %124 : vector<16x128xf32>
    %cst_16 = arith.constant 1.000000e+00 : f32
    %126 = vector.broadcast %cst_16 : f32 to vector<1x128xf32>
    %127 = arith.subf %126, %16 : vector<1x128xf32>
    %128 = vector.broadcast %8 : vector<16x1xf32> to vector<16x128xf32>
    %129 = vector.broadcast %127 : vector<1x128xf32> to vector<16x128xf32>
    %130 = arith.mulf %128, %129 : vector<16x128xf32>
    %131 = arith.addf %125, %130 : vector<16x128xf32>
    %cst_17 = arith.constant 0.000000e+00 : f32
    %132 = vector.broadcast %cst_17 : f32 to vector<16x128xf32>
    %133 = arith.subf %132, %131 : vector<16x128xf32>
    %c0_18 = arith.constant 0 : index
    %c0_19 = arith.constant 0 : index
    %134 = vector.load %arg3[%c0_18, %c0_19] : memref<128x128xf32, #tpu.memory_space<vmem>>, vector<128x128xf32>
    %135 = arith.mulf %0, %0 : vector<16x128xf32>
    %cst_20 = arith.constant dense<0.000000e+00> : vector<16xf32>
    %136 = vector.multi_reduction <add>, %135, %cst_20 [1] : vector<16x128xf32> to vector<16xf32>
    %137 = vector.shape_cast %136 : vector<16xf32> to vector<16x1xf32>
    %138 = arith.mulf %134, %134 : vector<128x128xf32>
    %cst_21 = arith.constant dense<0.000000e+00> : vector<128xf32>
    %139 = vector.multi_reduction <add>, %138, %cst_21 [0] : vector<128x128xf32> to vector<128xf32>
    %140 = vector.shape_cast %139 : vector<128xf32> to vector<1x128xf32>
    %cst_22 = arith.constant dense<0.000000e+00> : vector<16x128xf32>
    %141 = tpu.matmul %0, %134, %cst_22 {dimension_numbers = #tpu.dot_dimension_numbers<[1], [0], [0], [1], [0, 0, 1, 1], [], []>} : vector<16x128xf32>, vector<128x128xf32>, vector<16x128xf32> -> vector<16x128xf32>
    %142 = vector.broadcast %137 : vector<16x1xf32> to vector<16x128xf32>
    %143 = vector.broadcast %140 : vector<1x128xf32> to vector<16x128xf32>
    %144 = arith.addf %142, %143 : vector<16x128xf32>
    %cst_23 = arith.constant 2.000000e+00 : f32
    %145 = vector.broadcast %cst_23 : f32 to vector<16x128xf32>
    %146 = arith.mulf %145, %141 : vector<16x128xf32>
    %147 = arith.subf %144, %146 : vector<16x128xf32>
    %cst_24 = arith.constant 0.000000e+00 : f32
    %148 = vector.broadcast %cst_24 : f32 to vector<16x128xf32>
    %149 = arith.maximumf %147, %148 : vector<16x128xf32>
    %150 = math.sqrt %149 : vector<16x128xf32>
    %cst_25 = arith.constant 1.000000e+00 : f32
    %151 = vector.broadcast %cst_25 : f32 to vector<16x128xf32>
    %152 = arith.mulf %151, %43 : vector<16x128xf32>
    %cst_26 = arith.constant 2.500000e+00 : f32
    %153 = vector.broadcast %cst_26 : f32 to vector<16x128xf32>
    %154 = arith.mulf %153, %111 : vector<16x128xf32>
    %155 = arith.addf %152, %154 : vector<16x128xf32>
    %cst_27 = arith.constant 2.000000e+00 : f32
    %156 = vector.broadcast %cst_27 : f32 to vector<16x128xf32>
    %157 = arith.mulf %156, %155 : vector<16x128xf32>
    %cst_28 = arith.constant 1.000000e+00 : f32
    %158 = vector.broadcast %cst_28 : f32 to vector<16x128xf32>
    %159 = arith.mulf %158, %122 : vector<16x128xf32>
    %160 = arith.addf %157, %159 : vector<16x128xf32>
    %cst_29 = arith.constant 1.000000e+00 : f32
    %161 = vector.broadcast %cst_29 : f32 to vector<16x128xf32>
    %162 = arith.mulf %161, %133 : vector<16x128xf32>
    %163 = arith.addf %160, %162 : vector<16x128xf32>
    %cst_30 = arith.constant 2.000000e+00 : f32
    %164 = vector.broadcast %cst_30 : f32 to vector<16x128xf32>
    %165 = arith.mulf %164, %150 : vector<16x128xf32>
    %166 = arith.addf %163, %165 : vector<16x128xf32>
    %c0_31 = arith.constant 0 : index
    %c0_32 = arith.constant 0 : index
    %167 = vector.load %arg4[%c0_31, %c0_32] : memref<16x128xf32, #tpu.memory_space<vmem>>, vector<16x128xf32>
    tpu.vector_store %arg4[%c0_31, %c0_32], %166 {strides = array<i32>} : memref<16x128xf32, #tpu.memory_space<vmem>>, vector<16x128xf32>,
    return
  }
  func.func @transform_0(%arg0: i32) -> (i32, i32) {
    %c0_i32 = arith.constant 0 : i32
    %c0_i32_0 = arith.constant 0 : i32
    return %arg0, %c0_i32 : i32, i32
  }
  func.func @transform_1(%arg0: i32) -> (i32, i32) {
    %c0_i32 = arith.constant 0 : i32
    %c0_i32_0 = arith.constant 0 : i32
    %c0_i32_1 = arith.constant 0 : i32
    return %c0_i32, %c0_i32_0 : i32, i32
  }
  func.func @transform_2(%arg0: i32) -> (i32, i32) {
    %c0_i32 = arith.constant 0 : i32
    %c0_i32_0 = arith.constant 0 : i32
    %c0_i32_1 = arith.constant 0 : i32
    return %c0_i32, %c0_i32_0 : i32, i32
  }
  func.func @transform_3(%arg0: i32) -> (i32, i32) {
    %c0_i32 = arith.constant 0 : i32
    %c0_i32_0 = arith.constant 0 : i32
    return %arg0, %c0_i32 : i32, i32
  }
}

</mosaic_0001>

<llo_original>
// kernel: _cost_matrix_device.1
$region0: #{_cost_matrix_device.1}
  #allocation0 [shape = 'u32[]', space=smem, size = 0x4, offset = 0x4, fixed_abs, tag = 'smem constant byte address 0x4 - core index']
  #allocation1 [shape = 'u32[144,128]{1,0:T(1,128)}', space=vmem, size = 0x12000, scoped, tag = 'internal scratch']
  %s0 = inlined_call_operand.vmem [shape: f32[16,256], index: 0, kind: input, shape index: {}]
  %s1 = inlined_call_operand.vmem [shape: f32[8,128], index: 1, kind: input, shape index: {}]
  %s2 = inlined_call_operand.vmem [shape: f32[128,128], index: 2, kind: input, shape index: {}]
  %s3 = inlined_call_operand.vmem [shape: f32[16,128], index: 3, kind: output, shape index: {}]
  %s4 = sld [smem:[#allocation0]]
  $region22: #{_cost_matrix_device.1} parent=0
    _
  %s6 = ssub.s32 1, %s4
  %s7 = scalar_select 0, %s6, %s4
  // Predicated region
  $region2: #{_cost_matrix_device.1} parent=0 // pred_check
    _
  $region3: #{_cost_matrix_device.1} parent=0 // pred_check_branch
    %9 = sbr.rel (0) target = $region5
  $region4: #{_cost_matrix_device.1} parent=0 // pred_region
    _
  $region5: #{_cost_matrix_device.1} parent=0 // pred_fallthru
    _
  // Predicated region
  $region6: #{_cost_matrix_device.1} parent=0 // pred_check
    _
  $region7: #{_cost_matrix_device.1} parent=0 // pred_check_branch
    %11 = sbr.rel (0) target = $region9
  $region8: #{_cost_matrix_device.1} parent=0 // pred_region
    _
  $region9: #{_cost_matrix_device.1} parent=0 // pred_fallthru
    _
  // Predicated region
  $region10: #{_cost_matrix_device.1} parent=0 // pred_check
    _
  $region11: #{_cost_matrix_device.1} parent=0 // pred_check_branch
    %13 = sbr.rel (0) target = $region13
  $region12: #{_cost_matrix_device.1} parent=0 // pred_region
    _
  $region13: #{_cost_matrix_device.1} parent=0 // pred_fallthru
    _
  %v14 = vld [vmem:[%s0] sm:$0xff]
  %v15 = vld [vmem:[%s0 + $0x10] sm:$0xff]
  %v16 = vld [vmem:[%s0 + $0x8] sm:$0xff]
  %v17 = vld [vmem:[%s0 + $0x18] sm:$0xff]
  %v18 = vld [vmem:[%s1] sm:$0xff]
  %v20 = vrot.slane %v18, 2
  %v22 = vadd.f32 %v18, %v20
  %v23 = vmul.f32 %v22, 0.5
  %25 = vset.pattern.permute.xlu0 0
  %26 = vperm.xlu0 %25, %v16
  %v27 = vpop.permute.xlu0 %26
  %30 = vset.pattern.permute.xlu0 0
  %31 = vperm.xlu0 %30, %v17
  %v32 = vpop.permute.xlu0 %31
  %v34 = vlaneseq
  %v35 = vshrl.u32 %v34, 7
  %v36 = vsub.s32 0, %v35
  %v37 = vrot.slane %v23, %v36
  %v38 = vsub.f32 %v27, %v37
  %v39 = vsub.f32 %v32, %v37
  %v40 = vand.u32 2147483647, %v38
  %v41 = vand.u32 2147483647, %v39
  %42 = vset.pattern.permute.xlu0 1
  %43 = vperm.xlu0 %42, %v16
  %v44 = vpop.permute.xlu0 %43
  %46 = vset.pattern.permute.xlu0 1
  %47 = vperm.xlu0 %46, %v17
  %v48 = vpop.permute.xlu0 %47
  %v50 = vlaneseq
  %v51 = vshrl.u32 %v50, 7
  %v52 = vsub.s32 1, %v51
  %v53 = vrot.slane %v23, %v52
  %v54 = vsub.f32 %v44, %v53
  %v55 = vsub.f32 %v48, %v53
  %v56 = vand.u32 2147483647, %v54
  %v57 = vand.u32 2147483647, %v55
  %v58 = vadd.f32 %v40, %v56
  %v59 = vadd.f32 %v41, %v57
  %v60 = vrot.slane %v18, 6
  %v62 = vsub.f32 %v18, %v60
  %63 = vset.pattern.permute.xlu0 2
  %64 = vperm.xlu0 %63, %v16
  %v65 = vpop.permute.xlu0 %64
  %67 = vset.pattern.permute.xlu0 2
  %68 = vperm.xlu0 %67, %v17
  %v69 = vpop.permute.xlu0 %68
  %v71 = vlaneseq
  %v72 = vshrl.u32 %v71, 7
  %v73 = vsub.s32 2, %v72
  %v74 = vrot.slane %v62, %v73
  %v75 = vsub.f32 %v65, %v74
  %v76 = vsub.f32 %v69, %v74
  %v77 = vand.u32 2147483647, %v75
  %v78 = vand.u32 2147483647, %v76
  %v79 = vadd.f32 %v58, %v77
  %v80 = vadd.f32 %v59, %v78
  %81 = vset.pattern.permute.xlu0 3
  %82 = vperm.xlu0 %81, %v16
  %v83 = vpop.permute.xlu0 %82
  %85 = vset.pattern.permute.xlu0 3
  %86 = vperm.xlu0 %85, %v17
  %v87 = vpop.permute.xlu0 %86
  %v89 = vlaneseq
  %v90 = vshrl.u32 %v89, 7
  %v91 = vsub.s32 3, %v90
  %v92 = vrot.slane %v62, %v91
  %v93 = vsub.f32 %v83, %v92
  %v94 = vsub.f32 %v87, %v92
  %v95 = vand.u32 2147483647, %v93
  %v96 = vand.u32 2147483647, %v94
  %v97 = vadd.f32 %v79, %v95
  %v98 = vadd.f32 %v80, %v96
  %v99 = vmul.f32 %v16, 0.5
  %v100 = vmul.f32 %v17, 0.5
  %103 = vrot.lane.b32.xlu0 %v99, 126
  %v104 = vpop.permute.xlu0 %103
  %105 = vrot.lane.b32.xlu0 %v100, 126
  %v106 = vpop.permute.xlu0 %105
  %v109 = vsub.f32 %v16, %v104
  %v110 = vsub.f32 %v17, %v106
  %v111 = vadd.f32 %v16, %v104
  %v112 = vadd.f32 %v17, %v106
  %v113 = vsub.f32 %v111, %v109
  %v114 = vsub.f32 %v112, %v110
  %117 = vrot.lane.b32.xlu0 %v113, 127
  %v118 = vpop.permute.xlu0 %117
  %119 = vrot.lane.b32.xlu0 %v114, 127
  %v120 = vpop.permute.xlu0 %119
  %v123 = vmul.f32 %v113, %v118
  %v124 = vmul.f32 %v114, %v120
  %v126 = vrot.slane %v62, 1
  %v128 = vmul.f32 %v62, %v126
  %130 = vset.pattern.permute.xlu0 0
  %131 = vperm.xlu0 %130, %v111
  %v132 = vpop.permute.xlu0 %131
  %135 = vset.pattern.permute.xlu0 0
  %136 = vperm.xlu0 %135, %v112
  %v137 = vpop.permute.xlu0 %136
  %v139 = vlaneseq
  %v140 = vshrl.u32 %v139, 7
  %v141 = vsub.s32 2, %v140
  %v142 = vrot.slane %v18, %v141
  %v143 = vmin.f32 %v132, %v142
  %v144 = vmin.f32 %v137, %v142
  %146 = vset.pattern.permute.xlu0 0
  %147 = vperm.xlu0 %146, %v109
  %v148 = vpop.permute.xlu0 %147
  %151 = vset.pattern.permute.xlu0 0
  %152 = vperm.xlu0 %151, %v110
  %v153 = vpop.permute.xlu0 %152
  %v155 = vlaneseq
  %v156 = vshrl.u32 %v155, 7
  %v157 = vsub.s32 0, %v156
  %v158 = vrot.slane %v18, %v157
  %v159 = vmax.f32 %v148, %v158
  %v160 = vmax.f32 %v153, %v158
  %v161 = vsub.f32 %v143, %v159
  %v162 = vsub.f32 %v144, %v160
  %v163 = vmax.f32 %v161, 0.0
  %v164 = vmax.f32 %v162, 0.0
  %165 = vset.pattern.permute.xlu0 1
  %166 = vperm.xlu0 %165, %v111
  %v167 = vpop.permute.xlu0 %166
  %169 = vset.pattern.permute.xlu0 1
  %170 = vperm.xlu0 %169, %v112
  %v171 = vpop.permute.xlu0 %170
  %v173 = vlaneseq
  %v174 = vshrl.u32 %v173, 7
  %v175 = vsub.s32 3, %v174
  %v176 = vrot.slane %v18, %v175
  %v177 = vmin.f32 %v167, %v176
  %v178 = vmin.f32 %v171, %v176
  %179 = vset.pattern.permute.xlu0 1
  %180 = vperm.xlu0 %179, %v109
  %v181 = vpop.permute.xlu0 %180
  %183 = vset.pattern.permute.xlu0 1
  %184 = vperm.xlu0 %183, %v110
  %v185 = vpop.permute.xlu0 %184
  %v187 = vlaneseq
  %v188 = vshrl.u32 %v187, 7
  %v189 = vsub.s32 1, %v188
  %v190 = vrot.slane %v18, %v189
  %v191 = vmax.f32 %v181, %v190
  %v192 = vmax.f32 %v185, %v190
  %v193 = vsub.f32 %v177, %v191
  %v194 = vsub.f32 %v178, %v192
  %v195 = vmax.f32 %v193, 0.0
  %v196 = vmax.f32 %v194, 0.0
  %v197 = vmul.f32 %v163, %v195
  %v198 = vmul.f32 %v164, %v196
  %200 = vset.pattern.permute.xlu0 0
  %201 = vperm.xlu0 %200, %v123
  %v202 = vpop.permute.xlu0 %201
  %205 = vset.pattern.permute.xlu0 0
  %206 = vperm.xlu0 %205, %v124
  %v207 = vpop.permute.xlu0 %206
  %v209 = vlaneseq
  %v210 = vshrl.u32 %v209, 7
  %v211 = vsub.s32 2, %v210
  %v212 = vrot.slane %v128, %v211
  %v213 = vadd.f32 %v202, %v212
  %v214 = vadd.f32 %v207, %v212
  %v215 = vsub.f32 %v213, %v197
  %v216 = vsub.f32 %v214, %v198
  %v217 = vmax.f32 %v132, %v142
  %v218 = vmax.f32 %v137, %v142
  %v219 = vmin.f32 %v148, %v158
  %v220 = vmin.f32 %v153, %v158
  %v221 = vsub.f32 %v217, %v219
  %v222 = vsub.f32 %v218, %v220
  %v223 = vmax.f32 %v221, 0.0
  %v224 = vmax.f32 %v222, 0.0
  %v225 = vmax.f32 %v167, %v176
  %v226 = vmax.f32 %v171, %v176
  %v227 = vmin.f32 %v181, %v190
  %v228 = vmin.f32 %v185, %v190
  %v229 = vsub.f32 %v225, %v227
  %v230 = vsub.f32 %v226, %v228
  %v231 = vmax.f32 %v229, 0.0
  %v232 = vmax.f32 %v230, 0.0
  %v233 = vmul.f32 %v223, %v231
  %v234 = vmul.f32 %v224, %v232
  %v235 = vrcp.pop %v215
  %v236 = vrcp.pop %v216
  %v237 = vmul.f32 %v197, %v235
  %v238 = vmul.f32 %v198, %v236
  %v239 = vsub.f32 %v233, %v215
  %v240 = vsub.f32 %v234, %v216
  %v241 = vrcp.pop %v233
  %v242 = vrcp.pop %v234
  %v243 = vmul.f32 %v239, %v241
  %v244 = vmul.f32 %v240, %v242
  %v245 = vsub.f32 %v237, %v243
  %v246 = vsub.f32 %v238, %v244
  %v247 = vsub.f32 0.0, %v245
  %v248 = vsub.f32 0.0, %v246
  %249 = vset.pattern.permute.xlu0 5
  %250 = vperm.xlu0 %249, %v16
  %v251 = vpop.permute.xlu0 %250
  %253 = vset.pattern.permute.xlu0 5
  %254 = vperm.xlu0 %253, %v17
  %v255 = vpop.permute.xlu0 %254
  %v257 = vlaneseq
  %v258 = vshrl.u32 %v257, 7
  %v259 = vsub.s32 4, %v258
  %v260 = vrot.slane %v18, %v259
  %v261 = vmul.f32 %v251, %v260
  %v262 = vmul.f32 %v255, %v260
  %v263 = vsub.f32 1.0, %v18
  %264 = vset.pattern.permute.xlu0 4
  %265 = vperm.xlu0 %264, %v16
  %v266 = vpop.permute.xlu0 %265
  %268 = vset.pattern.permute.xlu0 4
  %269 = vperm.xlu0 %268, %v17
  %v270 = vpop.permute.xlu0 %269
  %v272 = vlaneseq
  %v273 = vshrl.u32 %v272, 7
  %v274 = vsub.s32 4, %v273
  %v275 = vrot.slane %v263, %v274
  %v276 = vmul.f32 %v266, %v275
  %v277 = vmul.f32 %v270, %v275
  %v278 = vadd.f32 %v261, %v276
  %v279 = vadd.f32 %v262, %v277
  %v280 = vsub.f32 0.0, %v278
  %v281 = vsub.f32 0.0, %v279
  %282 = vset.pattern.permute.xlu0 7
  %283 = vperm.xlu0 %282, %v16
  %v284 = vpop.permute.xlu0 %283
  %286 = vset.pattern.permute.xlu0 7
  %287 = vperm.xlu0 %286, %v17
  %v288 = vpop.permute.xlu0 %287
  %v290 = vlaneseq
  %v291 = vshrl.u32 %v290, 7
  %v292 = vsub.s32 5, %v291
  %v293 = vrot.slane %v18, %v292
  %v294 = vmul.f32 %v284, %v293
  %v295 = vmul.f32 %v288, %v293
  %296 = vset.pattern.permute.xlu0 6
  %297 = vperm.xlu0 %296, %v16
  %v298 = vpop.permute.xlu0 %297
  %300 = vset.pattern.permute.xlu0 6
  %301 = vperm.xlu0 %300, %v17
  %v302 = vpop.permute.xlu0 %301
  %v304 = vlaneseq
  %v305 = vshrl.u32 %v304, 7
  %v306 = vsub.s32 5, %v305
  %v307 = vrot.slane %v263, %v306
  %v308 = vmul.f32 %v298, %v307
  %v309 = vmul.f32 %v302, %v307
  %v310 = vadd.f32 %v294, %v308
  %v311 = vadd.f32 %v295, %v309
  %v312 = vsub.f32 0.0, %v310
  %v313 = vsub.f32 0.0, %v311
  %v314 = vld [vmem:[%s2] sm:$0xff]
  %v315 = vld [vmem:[%s2 + $0x8] sm:$0xff]
  %v316 = vld [vmem:[%s2 + $0x10] sm:$0xff]
  %v317 = vld [vmem:[%s2 + $0x18] sm:$0xff]
  %v318 = vld [vmem:[%s2 + $0x20] sm:$0xff]
  %v319 = vld [vmem:[%s2 + $0x28] sm:$0xff]
  %v320 = vld [vmem:[%s2 + $0x30] sm:$0xff]
  %v321 = vld [vmem:[%s2 + $0x38] sm:$0xff]
  %v322 = vld [vmem:[%s2 + $0x40] sm:$0xff]
  %v323 = vld [vmem:[%s2 + $0x48] sm:$0xff]
  %v324 = vld [vmem:[%s2 + $0x50] sm:$0xff]
  %v325 = vld [vmem:[%s2 + $0x58] sm:$0xff]
  %v326 = vld [vmem:[%s2 + $0x60] sm:$0xff]
  %v327 = vld [vmem:[%s2 + $0x68] sm:$0xff]
  %v328 = vld [vmem:[%s2 + $0x70] sm:$0xff]
  %v329 = vld [vmem:[%s2 + $0x78] sm:$0xff]
  %v330 = vmul.f32 %v14, %v14
  %v331 = vmul.f32 %v15, %v15
  %332 = vadd.xlane.f32.xlu0 %v330
  %v333 = vpop.xlane.xlu0 %332
  %334 = vadd.xlane.f32.xlu0 %v331
  %v335 = vpop.xlane.xlu0 %334
  %v336 = vmul.f32 %v314, %v314
  %v337 = vmul.f32 %v315, %v315
  %v338 = vmul.f32 %v316, %v316
  %v339 = vmul.f32 %v317, %v317
  %v340 = vmul.f32 %v318, %v318
  %v341 = vmul.f32 %v319, %v319
  %v342 = vmul.f32 %v320, %v320
  %v343 = vmul.f32 %v321, %v321
  %v344 = vmul.f32 %v322, %v322
  %v345 = vmul.f32 %v323, %v323
  %v346 = vmul.f32 %v324, %v324
  %v347 = vmul.f32 %v325, %v325
  %v348 = vmul.f32 %v326, %v326
  %v349 = vmul.f32 %v327, %v327
  %v350 = vmul.f32 %v328, %v328
  %v351 = vmul.f32 %v329, %v329
  %v352 = vadd.f32 %v336, %v337
  %v353 = vadd.f32 %v352, %v338
  %v354 = vadd.f32 %v353, %v339
  %v355 = vadd.f32 %v354, %v340
  %v356 = vadd.f32 %v355, %v341
  %v357 = vadd.f32 %v356, %v342
  %v358 = vadd.f32 %v357, %v343
  %v359 = vadd.f32 %v358, %v344
  %v360 = vadd.f32 %v359, %v345
  %v361 = vadd.f32 %v360, %v346
  %v362 = vadd.f32 %v361, %v347
  %v363 = vadd.f32 %v362, %v348
  %v364 = vadd.f32 %v363, %v349
  %v365 = vadd.f32 %v364, %v350
  %v366 = vadd.f32 %v365, %v351
  %v367 = vrot.slane %v366, 4
  %v368 = vadd.f32 %v366, %v367
  %v369 = vrot.slane %v368, 2
  %v370 = vadd.f32 %v368, %v369
  %v371 = vrot.slane %v370, 1
  %v372 = vadd.f32 %v370, %v371
  %373 = vmatprep.subr.mxu0 0.0
  %374 = vmatpush1.msra.mxu0 %v329
  %375 = vmatprep.subr.mxu0 0.0
  %376 = vmatpush1.msra.mxu0 %v328
  %377 = vmatprep.subr.mxu0 0.0
  %378 = vmatpush1.msra.mxu0 %v327
  %379 = vmatprep.subr.mxu0 0.0
  %380 = vmatpush1.msra.mxu0 %v326
  %381 = vmatprep.subr.mxu0 0.0
  %382 = vmatpush1.msra.mxu0 %v325
  %383 = vmatprep.subr.mxu0 0.0
  %384 = vmatpush1.msra.mxu0 %v324
  %385 = vmatprep.subr.mxu0 0.0
  %386 = vmatpush1.msra.mxu0 %v323
  %387 = vmatprep.subr.mxu0 0.0
  %388 = vmatpush1.msra.mxu0 %v322
  %389 = vmatprep.subr.mxu0 0.0
  %390 = vmatpush1.msra.mxu0 %v321
  %391 = vmatprep.subr.mxu0 0.0
  %392 = vmatpush1.msra.mxu0 %v320
  %393 = vmatprep.subr.mxu0 0.0
  %394 = vmatpush1.msra.mxu0 %v319
  %395 = vmatprep.subr.mxu0 0.0
  %396 = vmatpush1.msra.mxu0 %v318
  %397 = vmatprep.subr.mxu0 0.0
  %398 = vmatpush1.msra.mxu0 %v317
  %399 = vmatprep.subr.mxu0 0.0
  %400 = vmatpush1.msra.mxu0 %v316
  %401 = vmatprep.subr.mxu0 0.0
  %402 = vmatpush1.msra.mxu0 %v315
  %403 = vmatprep.subr.mxu0 0.0
  %404 = vmatpush1.msra.mxu0 %v314
  %405 = vmatprep.subr.mxu0 0.0
  %406 = vmatpush2.msra.mxu0 0.0
  %407 = vmatprep.subr.mxu0 0.0
  %408 = vmatpush2.msra.mxu0 0.0
  %409 = vmatprep.subr.mxu0 0.0
  %410 = vmatpush2.msra.mxu0 0.0
  %411 = vmatprep.subr.mxu0 0.0
  %412 = vmatpush2.msra.mxu0 0.0
  %413 = vmatprep.subr.mxu0 0.0
  %414 = vmatpush2.msra.mxu0 0.0
  %415 = vmatprep.subr.mxu0 0.0
  %416 = vmatpush2.msra.mxu0 0.0
  %417 = vmatprep.subr.mxu0 0.0
  %418 = vmatpush2.msra.mxu0 0.0
  %419 = vmatprep.subr.mxu0 0.0
  %420 = vmatpush2.msra.mxu0 0.0
  %421 = vmatprep.subr.mxu0 0.0
  %422 = vmatpush2.msra.mxu0 0.0
  %423 = vmatprep.subr.mxu0 0.0
  %424 = vmatpush2.msra.mxu0 0.0
  %425 = vmatprep.subr.mxu0 0.0
  %426 = vmatpush2.msra.mxu0 0.0
  %427 = vmatprep.subr.mxu0 0.0
  %428 = vmatpush2.msra.mxu0 0.0
  %429 = vmatprep.subr.mxu0 0.0
  %430 = vmatpush2.msra.mxu0 0.0
  %431 = vmatprep.subr.mxu0 0.0
  %432 = vmatpush2.msra.mxu0 0.0
  %433 = vmatprep.subr.mxu0 0.0
  %434 = vmatpush2.msra.mxu0 0.0
  %435 = vmatprep.subr.mxu0 0.0
  %436 = vmatpush2.msra.mxu0 0.0
  %437 = vmatprep.mubr.f32.mxu0 0.0
  %438 = vmatmul.mubr.f32.gmra.mxu0 %v14
  %v439 = vpop.f32.mrf.mxu0
  %v440 = vadd.f32 0.0, %v439
  %v441 = vpop.f32.mrf.mxu0
  %442 = vmatprep.mubr.f32.mxu0 0.0
  %443 = vmatmul.mubr.f32.gmra.mxu0 %v15
  %v444 = vpop.f32.mrf.mxu0
  %v445 = vadd.f32 0.0, %v444
  %v446 = vpop.f32.mrf.mxu0
  %447 = vdwg.mxu0
  %v448 = vadd.f32 %v333, %v372
  %v449 = vadd.f32 %v335, %v372
  %v450 = vmul.f32 %v440, 2.0
  %v451 = vmul.f32 %v445, 2.0
  %v452 = vsub.f32 %v448, %v450
  %v453 = vsub.f32 %v449, %v451
  %v454 = vmax.f32 %v452, 0.0
  %v455 = vmax.f32 %v453, 0.0
  %v456 = vrsqrt.pop %v454
  %v457 = vmul.f32 %v454, %v456
  %vm458 = vcmp.eq.f32.partialorder %v454, inf
  %v459 = vsel %vm458, %v454, %v457
  %vm460 = vcmp.eq.f32.partialorder %v454, 0.0
  %v461 = vand.u32 %v454, 2147483648
  %v462 = vsel %vm460, %v461, %v459
  %v463 = vrsqrt.pop %v455
  %v464 = vmul.f32 %v455, %v463
  %vm465 = vcmp.eq.f32.partialorder %v455, inf
  %v466 = vsel %vm465, %v455, %v464
  %vm467 = vcmp.eq.f32.partialorder %v455, 0.0
  %v468 = vand.u32 %v455, 2147483648
  %v469 = vsel %vm467, %v468, %v466
  %v470 = vmul.f32 %v247, 2.5
  %v471 = vmul.f32 %v248, 2.5
  %v472 = vadd.f32 %v97, %v470
  %v473 = vadd.f32 %v98, %v471
  %v474 = vmul.f32 %v472, 2.0
  %v475 = vmul.f32 %v473, 2.0
  %v476 = vadd.f32 %v474, %v280
  %v477 = vadd.f32 %v475, %v281
  %v478 = vadd.f32 %v476, %v312
  %v479 = vadd.f32 %v477, %v313
  %v480 = vmul.f32 %v462, 2.0
  %v481 = vmul.f32 %v469, 2.0
  %v482 = vadd.f32 %v478, %v480
  %v483 = vadd.f32 %v479, %v481
  %484 = vst [vmem:[%s3] sm:$0xff] %v482
  %485 = vst [vmem:[%s3 + $0x8] sm:$0xff] %v483
  // Predicated region
  $region14: #{_cost_matrix_device.1} parent=0 // pred_check
    _
  $region15: #{_cost_matrix_device.1} parent=0 // pred_check_branch
    %487 = sbr.rel (0) target = $region17
  $region16: #{_cost_matrix_device.1} parent=0 // pred_region
    _
  $region17: #{_cost_matrix_device.1} parent=0 // pred_fallthru
    _
  // Predicated region
  $region18: #{_cost_matrix_device.1} parent=0 // pred_check
    _
  $region19: #{_cost_matrix_device.1} parent=0 // pred_check_branch
    %489 = sbr.rel (0) target = $region21
  $region20: #{_cost_matrix_device.1} parent=0 // pred_region
    _
  $region21: #{_cost_matrix_device.1} parent=0 // pred_fallthru
    _

</llo_original>
